<compile_context>
chip_gen: v5e
topology: v5e:2x2
jax: 0.10.0
libtpu: 0.0.40
codegen_flags: <defaults>
</compile_context>

<pallas_src>
from typing import NamedTuple

import jax
import jax.numpy as jnp
from jax.experimental import pallas as pl
from jax.experimental.pallas import tpu as pltpu


def _round_up(x: int, m: int) -> int:
    return (x + m - 1) // m * m


class _Layout(NamedTuple):
    V: int
    H: int
    S: int
    Z: int
    K: int
    heads: int
    N1: int      # encode output width  (V*K)
    N2: int      # upscale output width (V*H)
    N3: int      # downscale output width (2*heads*V*Z)
    HVZ: int     # heads*V*Z
    r_enc: int   # row offsets inside the packed weight buffer (8-aligned)
    r_up: int
    r_down: int
    w_rows: int
    w_cols: int
    b_enc: int   # column offsets inside the packed bias buffer (128-aligned)
    b_up: int
    b_down: int
    b_total: int


def _make_layout(*, n_variables, n_hidden, n_heads_sharing_slider,
                 n_base_heads, n_token_dim) -> _Layout:
    assert n_base_heads % n_heads_sharing_slider == 0
    V, H = n_variables, n_hidden
    S = n_base_heads // n_heads_sharing_slider
    Z = n_token_dim
    K = 2 * Z * S
    heads = n_base_heads
    N1, N2, N3 = V * K, V * H, 2 * heads * V * Z
    HVZ = heads * V * Z
    r_enc = 0
    r_up = r_enc + _round_up(V, 8)
    r_down = r_up + _round_up(N1, 8)
    w_rows = r_down + _round_up(N2, 8)
    w_cols = _round_up(max(N1, N2, N3), 128)
    b_enc = 0
    b_up = b_enc + _round_up(N1, 128)
    b_down = b_up + _round_up(N2, 128)
    b_total = b_down + _round_up(N3, 128)
    return _Layout(V, H, S, Z, K, heads, N1, N2, N3, HVZ,
                   r_enc, r_up, r_down, w_rows, w_cols,
                   b_enc, b_up, b_down, b_total)


def _make_slider_kernel(L: _Layout):
    """Fully fused slider MLP: 3 chained MXU matmuls, single invocation, no grid."""

    def kernel(prefix_ref, w_ref, b_ref, keys_ref, vals_ref):
        # prefix_ref : (B, V)         — cast in-kernel (free VPU slot)
        # w_ref      : (w_rows, w_cols) packed block-diagonal weights
        # b_ref      : (1, b_total)     packed biases
        # keys_ref   : (B, heads*V*Z)   lane-dense output
        # vals_ref   : (B, heads*V*Z)   lane-dense output
        p = prefix_ref[...].astype(jnp.float32)

        # encode: per-variable outer product folded into one MXU matmul
        enc_w = w_ref[L.r_enc:L.r_enc + L.V, 0:L.N1]
        enc_b = b_ref[0:1, L.b_enc:L.b_enc + L.N1]
        x = jnp.tanh(jnp.dot(p, enc_w, preferred_element_type=jnp.float32) + enc_b)

        # upscale (block-diagonal): (B, V*K) @ (V*K, V*H)
        up_w = w_ref[L.r_up:L.r_up + L.N1, 0:L.N2]
        up_b = b_ref[0:1, L.b_up:L.b_up + L.N2]
        h = jnp.tanh(jnp.dot(x, up_w, preferred_element_type=jnp.float32) + up_b)

        # downscale (block-diagonal, columns pre-permuted/duplicated so the
        # result is already in [keys|values] x [heads, V, Z] order)
        dn_w = w_ref[L.r_down:L.r_down + L.N2, 0:L.N3]
        dn_b = b_ref[0:1, L.b_down:L.b_down + L.N3]
        y = jnp.dot(h, dn_w, preferred_element_type=jnp.float32) + dn_b

        keys_ref[...] = y[:, 0:L.HVZ].astype(keys_ref.dtype)
        vals_ref[...] = y[:, L.HVZ:2 * L.HVZ].astype(vals_ref.dtype)

    return kernel


def pack_slider_params(params, *, n_variables, n_hidden, n_heads_sharing_slider,
                       n_base_heads, n_token_dim):
    """One-time layout prep: PyTorch nn.Linear layouts -> packed kernel layout.

    Call once at parameter-load time; slider_forward consumes the result.
    """
    L = _make_layout(n_variables=n_variables, n_hidden=n_hidden,
                     n_heads_sharing_slider=n_heads_sharing_slider,
                     n_base_heads=n_base_heads, n_token_dim=n_token_dim)
    V, H, S, Z, K, heads = L.V, L.H, L.S, L.Z, L.K, L.heads
    f32 = jnp.float32
    eye = jnp.eye(V, dtype=f32)

    # encode_linear.weight: [V*K, 1] -> block-structured [V, V*K]
    enc_w = params["encode_w"].astype(f32).reshape(V, K)
    enc_w_blk = jnp.einsum("vw,vk->wvk", eye, enc_w).reshape(V, V * K)
    enc_b = params["encode_b"].astype(f32).reshape(V * K)

    # upscale_linear.weight: [V*H, K] -> per-variable (K, H) blocks on the diagonal
    up_w_t = params["upscale_w"].astype(f32).reshape(V, H, K).transpose(0, 2, 1)
    up_w_blk = jnp.einsum("vw,vkh->vkwh", eye, up_w_t).reshape(V * K, V * H)
    up_b = params["upscale_b"].astype(f32).reshape(V * H)

    # downscale_linear.weight: [V*K, H] -> per-variable (H, K) blocks on the diagonal
    down_w_t = params["downscale_w"].astype(f32).reshape(V, K, H).transpose(0, 2, 1)
    down_w_blk = jnp.einsum("vw,vhk->vhwk", eye, down_w_t).reshape(V * H, V * K)
    down_b = params["downscale_b"].astype(f32).reshape(V * K)

    # Bake the head-sharing/key-value split into the downscale columns:
    # output column j = (kv, h, v, z) sources original column v*K + kv*S*Z + (h%S)*Z + z
    h_idx = jnp.arange(heads)
    col_keys = (jnp.arange(V)[None, :, None] * K
                + (h_idx % S)[:, None, None] * Z
                + jnp.arange(Z)[None, None, :]).reshape(-1)      # [heads*V*Z]
    col_vals = col_keys + S * Z
    cols = jnp.concatenate([col_keys, col_vals])                  # [2*heads*V*Z]
    down_w_out = down_w_blk[:, cols]                              # [V*H, 2*heads*V*Z]
    down_b_out = down_b[cols]

    # Pack all weights into one VMEM buffer (8-aligned row offsets) and all
    # biases into one (128-aligned column offsets) -> 3 kernel inputs total.
    W = jnp.zeros((L.w_rows, L.w_cols), f32)
    W = W.at[L.r_enc:L.r_enc + V, 0:L.N1].set(enc_w_blk)
    W = W.at[L.r_up:L.r_up + L.N1, 0:L.N2].set(up_w_blk)
    W = W.at[L.r_down:L.r_down + L.N2, 0:L.N3].set(down_w_out)

    bias = jnp.zeros((1, L.b_total), f32)
    bias = bias.at[0, L.b_enc:L.b_enc + L.N1].set(enc_b)
    bias = bias.at[0, L.b_up:L.b_up + L.N2].set(up_b)
    bias = bias.at[0, L.b_down:L.b_down + L.N3].set(down_b_out)

    packed = {
        "W": W,
        "bias": bias,
        "attn_factor": params["attn_factor"].astype(f32),
    }
    # Materialize once so no transposes/gathers/packing run in the forward path.
    return jax.tree_util.tree_map(jax.block_until_ready, packed)


def slider_forward(prefix, packed, *, n_variables, n_hidden,
                   n_heads_sharing_slider, n_base_heads, n_token_dim):
    """JAX/Pallas equivalent of SliderModel.forward (inference)."""
    L = _make_layout(n_variables=n_variables, n_hidden=n_hidden,
                     n_heads_sharing_slider=n_heads_sharing_slider,
                     n_base_heads=n_base_heads, n_token_dim=n_token_dim)
    B = prefix.shape[0]

    vmem = lambda: pl.BlockSpec(memory_space=pltpu.MemorySpace.VMEM)
    keys_flat, vals_flat = pl.pallas_call(
        _make_slider_kernel(L),
        out_shape=(jax.ShapeDtypeStruct((B, L.HVZ), jnp.float32),
                   jax.ShapeDtypeStruct((B, L.HVZ), jnp.float32)),
        in_specs=[vmem(), vmem(), vmem()],
        out_specs=(vmem(), vmem()),
    )(prefix, packed["W"], packed["bias"])

    # Only free reshapes remain outside the kernel.
    slider_keys = keys_flat.reshape(B, L.heads, L.V, L.Z)
    slider_values = vals_flat.reshape(B, L.heads, L.V, L.Z)
    attention_factor = packed["attn_factor"][0, 0]   # scalar (zero-init, never reinit)
    return slider_keys, slider_values, attention_factor


def _reference_forward(prefix, params, *, n_variables, n_hidden,
                       n_heads_sharing_slider, n_base_heads, n_token_dim):
    """Pure-JAX re-implementation of the PyTorch forward, for validation."""
    V, H = n_variables, n_hidden
    S = n_base_heads // n_heads_sharing_slider
    Z = n_token_dim
    K = 2 * Z * S
    B = prefix.shape[0]
    prefix = prefix.astype(jnp.float32)[..., None]              # [B, V, 1]

    enc_w = params["encode_w"].reshape(V, K, 1)
    enc_b = params["encode_b"].reshape(1, V, K)
    x = jnp.tanh(jnp.einsum("VKI,BVI->BVK", enc_w, prefix) + enc_b)

    up_w = params["upscale_w"].reshape(V, H, K)
    up_b = params["upscale_b"].reshape(1, V, H)
    x = jnp.tanh(jnp.einsum("VHK,BVK->BVH", up_w, x) + up_b)

    down_w = params["downscale_w"].reshape(V, K, H)
    down_b = params["downscale_b"].reshape(1, V, K)
    x = jnp.einsum("VKH,BVH->BVK", down_w, x) + down_b

    x = x.reshape(B, V, 2, S, Z)
    x = jnp.broadcast_to(x[:, :, :, None, :, :],
                         (B, V, 2, n_heads_sharing_slider, S, Z))
    x = x.reshape(B, V, 2, n_heads_sharing_slider * S, Z)
    x = x.transpose(0, 3, 1, 4, 2)
    return x[..., 0], x[..., 1], params["attn_factor"][0, 0]


if __name__ == "__main__":
    # Small, self-consistent configuration.
    n_variables = 4
    n_hidden = 32
    n_heads_sharing_slider = 2
    n_base_heads = 4
    n_token_dim = 16
    n_slider_heads = n_base_heads // n_heads_sharing_slider
    kv_size = 2 * n_token_dim * n_slider_heads        # 64
    batch = 2   # NOTE: callers should stack repeated slider evals to B>=8 to
                # fill f32 sublanes; the kernel cost is ~all fixed overhead.

    key = jax.random.PRNGKey(0)
    k0, k1, k2, k3, k4, k5, k6 = jax.random.split(key, 7)

    # Deterministic synthetic parameters (PyTorch nn.Linear layouts).
    params = {
        "encode_w": 0.05 * jax.random.normal(k0, (n_variables * kv_size, 1), jnp.float32),
        "encode_b": 0.05 * jax.random.normal(k1, (n_variables * kv_size,), jnp.float32),
        "upscale_w": 0.05 * jax.random.normal(k2, (n_variables * n_hidden, kv_size), jnp.float32),
        "upscale_b": 0.05 * jax.random.normal(k3, (n_variables * n_hidden,), jnp.float32),
        "downscale_w": 0.05 * jax.random.normal(k4, (n_variables * kv_size, n_hidden), jnp.float32),
        "downscale_b": 0.05 * jax.random.normal(k5, (n_variables * kv_size,), jnp.float32),
        "attn_factor": jnp.zeros((1, 1), jnp.float32),   # zero-init, never reinitialized
    }

    prefix = jax.random.uniform(k6, (batch, n_variables), jnp.float32, -1.0, 1.0)

    cfg = dict(n_variables=n_variables, n_hidden=n_hidden,
               n_heads_sharing_slider=n_heads_sharing_slider,
               n_base_heads=n_base_heads, n_token_dim=n_token_dim)

    # One-time weight layout prep (hoisted out of the forward hot path).
    packed = pack_slider_params(params, **cfg)

    keys_out, values_out, factor = slider_forward(prefix, packed, **cfg)
    jax.block_until_ready((keys_out, values_out, factor))

    # Validate against a pure-JAX reference of the PyTorch forward.
    ref_k, ref_v, ref_f = _reference_forward(prefix, params, **cfg)
    assert keys_out.shape == (batch, n_base_heads, n_variables, n_token_dim)
    assert values_out.shape == (batch, n_base_heads, n_variables, n_token_dim)
    assert jnp.allclose(keys_out, ref_k, atol=1e-5, rtol=1e-5)
    assert jnp.allclose(values_out, ref_v, atol=1e-5, rtol=1e-5)
    assert jnp.allclose(factor, ref_f)

    print("KERNEL_OK")
</pallas_src>

<mosaic_0001>
module attributes {stable_mosaic.version = 11 : i64} {
  func.func @kernel(%arg0: memref<2x4xf32, #tpu.memory_space<vmem>>, %arg1: memref<392x512xf32, #tpu.memory_space<vmem>>, %arg2: memref<1x896xf32, #tpu.memory_space<vmem>>, %arg3: memref<2x256xf32, #tpu.memory_space<vmem>>, %arg4: memref<2x256xf32, #tpu.memory_space<vmem>>) attributes {dimension_semantics = [], scalar_prefetch = 0 : i64, scratch_operands = 0 : i64, tpu.core_type = #tpu.core_type<tc>} {
    %c0 = arith.constant 0 : index
    %c0_0 = arith.constant 0 : index
    %0 = vector.load %arg0[%c0, %c0_0] : memref<2x4xf32, #tpu.memory_space<vmem>>, vector<2x4xf32>
    %c0_1 = arith.constant 0 : index
    %c0_2 = arith.constant 0 : index
    %1 = vector.load %arg1[%c0_1, %c0_2] : memref<392x512xf32, #tpu.memory_space<vmem>>, vector<4x256xf32>
    %c0_3 = arith.constant 0 : index
    %c0_4 = arith.constant 0 : index
    %2 = vector.load %arg2[%c0_3, %c0_4] : memref<1x896xf32, #tpu.memory_space<vmem>>, vector<1x256xf32>
    %cst = arith.constant dense<0.000000e+00> : vector<2x256xf32>
    %3 = tpu.matmul %0, %1, %cst {dimension_numbers = #tpu.dot_dimension_numbers<[1], [0], [0], [1], [0, 0, 1, 1], [], []>} : vector<2x4xf32>, vector<4x256xf32>, vector<2x256xf32> -> vector<2x256xf32>
    %4 = vector.broadcast %2 : vector<1x256xf32> to vector<2x256xf32>
    %5 = arith.addf %3, %4 : vector<2x256xf32>
    %6 = math.tanh %5 : vector<2x256xf32>
    %c8 = arith.constant 8 : index
    %c0_5 = arith.constant 0 : index
    %7 = vector.load %arg1[%c8, %c0_5] : memref<392x512xf32, #tpu.memory_space<vmem>>, vector<256x128xf32>
    %c0_6 = arith.constant 0 : index
    %c256 = arith.constant 256 : index
    %8 = vector.load %arg2[%c0_6, %c256] : memref<1x896xf32, #tpu.memory_space<vmem>>, vector<1x128xf32>
    %cst_7 = arith.constant dense<0.000000e+00> : vector<2x128xf32>
    %9 = tpu.matmul %6, %7, %cst_7 {dimension_numbers = #tpu.dot_dimension_numbers<[1], [0], [0], [1], [0, 0, 1, 1], [], []>} : vector<2x256xf32>, vector<256x128xf32>, vector<2x128xf32> -> vector<2x128xf32>
    %10 = vector.broadcast %8 : vector<1x128xf32> to vector<2x128xf32>
    %11 = arith.addf %9, %10 : vector<2x128xf32>
    %12 = math.tanh %11 : vector<2x128xf32>
    %c264 = arith.constant 264 : index
    %c0_8 = arith.constant 0 : index
    %13 = vector.load %arg1[%c264, %c0_8] : memref<392x512xf32, #tpu.memory_space<vmem>>, vector<128x512xf32>
    %c0_9 = arith.constant 0 : index
    %c384 = arith.constant 384 : index
    %14 = vector.load %arg2[%c0_9, %c384] : memref<1x896xf32, #tpu.memory_space<vmem>>, vector<1x512xf32>
    %cst_10 = arith.constant dense<0.000000e+00> : vector<2x512xf32>
    %15 = tpu.matmul %12, %13, %cst_10 {dimension_numbers = #tpu.dot_dimension_numbers<[1], [0], [0], [1], [0, 0, 1, 1], [], []>} : vector<2x128xf32>, vector<128x512xf32>, vector<2x512xf32> -> vector<2x512xf32>
    %16 = vector.broadcast %14 : vector<1x512xf32> to vector<2x512xf32>
    %17 = arith.addf %15, %16 : vector<2x512xf32>
    %18 = vector.extract_strided_slice %17 {offsets = [0, 0], sizes = [2, 256], strides = [1, 1]} : vector<2x512xf32> to vector<2x256xf32>
    %c0_11 = arith.constant 0 : index
    %c0_12 = arith.constant 0 : index
    %19 = vector.load %arg3[%c0_11, %c0_12] : memref<2x256xf32, #tpu.memory_space<vmem>>, vector<2x256xf32>
    tpu.vector_store %arg3[%c0_11, %c0_12], %18 {strides = array<i32>} : memref<2x256xf32, #tpu.memory_space<vmem>>, vector<2x256xf32>,
    %20 = vector.extract_strided_slice %17 {offsets = [0, 256], sizes = [2, 256], strides = [1, 1]} : vector<2x512xf32> to vector<2x256xf32>
    %c0_13 = arith.constant 0 : index
    %c0_14 = arith.constant 0 : index
    %21 = vector.load %arg4[%c0_13, %c0_14] : memref<2x256xf32, #tpu.memory_space<vmem>>, vector<2x256xf32>
    tpu.vector_store %arg4[%c0_13, %c0_14], %20 {strides = array<i32>} : memref<2x256xf32, #tpu.memory_space<vmem>>, vector<2x256xf32>,
    return
  }
}

</mosaic_0001>

<llo_original>
// kernel: tpu_custom_call.1
$region0: #{tpu_custom_call.1}
  #allocation0 [shape = 'u32[]', space=smem, size = 0x4, offset = 0x4, fixed_abs, tag = 'smem constant byte address 0x4 - core index']
  #allocation1 [shape = 'u32[72,128]{1,0:T(1,128)}', space=vmem, size = 0x9000, scoped, tag = 'internal scratch']
  %s0 = inlined_call_operand.hbm [shape: f32[2,4], index: 0, kind: input, shape index: {}]
  %s1 = inlined_call_operand.hbm [shape: f32[392,512], index: 1, kind: input, shape index: {}]
  %s2 = inlined_call_operand.hbm [shape: f32[1,896], index: 2, kind: input, shape index: {}]
  %s3 = inlined_call_operand.hbm [shape: f32[2,256], index: 3, kind: output, shape index: {0}]
  %s4 = inlined_call_operand.hbm [shape: f32[2,256], index: 4, kind: output, shape index: {1}]
  %5 = xla_tuple %s3, %s4
  %s6 = sld [smem:[#allocation0]]
  $region42: #{tpu_custom_call.1} parent=0
    _
  %s8 = ssub.s32 1, %s6
  %s9 = scalar_select 0, %s8, %s6
  $region1: #{tpu_custom_call.1} parent=0
    #allocation2 [shape = 'u8[1024]{0}', space=vmem, size = 0x400, scoped, tag = 'input window, operand 0, single buffered']
    #allocation3 [shape = 's32[1]{0}', space=sflag, size = 0x4, scoped, tag = 'scoped memory for tpu_custom_call.1']
    #allocation4 [shape = 's32[1]{0}', space=sflag, size = 0x4, scoped, tag = 'scoped memory for tpu_custom_call.1']
    #allocation5 [shape = 'u8[802816]{0}', space=vmem, size = 0xc4000, scoped, tag = 'input window, operand 1, single buffered']
    #allocation6 [shape = 's32[1]{0}', space=sflag, size = 0x4, scoped, tag = 'scoped memory for tpu_custom_call.1']
    #allocation7 [shape = 'u8[3584]{0}', space=vmem, size = 0x1000, scoped, tag = 'input window, operand 2, single buffered']
    #allocation8 [shape = 'u8[2048]{0}', space=vmem, size = 0x800, scoped, tag = 'output window, operand 0, single buffered']
    #allocation9 [shape = 'u8[2048]{0}', space=vmem, size = 0x800, scoped, tag = 'output window, operand 1, single buffered']
    #allocation10 [shape = 's32[1]{0}', space=sflag, size = 0x4, scoped, tag = 'scoped memory for tpu_custom_call.1']
    %10 = vsyncpa [#allocation3], 0
    %11 = vsyncpa [#allocation6], 0
    %12 = vsyncpa [#allocation4], 0
    %13 = vsyncpa [#allocation10], 0
    // Predicated region
    $region2: #{tpu_custom_call.1} parent=1 // pred_check
      _
    $region3: #{tpu_custom_call.1} parent=1 // pred_check_branch
      %15 = sbr.rel (0) target = $region5
    $region4: #{tpu_custom_call.1} parent=1 // pred_region
      %17 = vsyncadd [#allocation3], 0
      %s19 = sshll.u32 %s0, 4
      %s20 = int_to_ptr.hbm [resolvable:$true] %s19
      %s21 = sshll.u32 [#allocation2], 4
      %s22 = int_to_ptr.vmem [resolvable:$true] %s21
      %24 = dma.hbm_to_vmem [thread:$0]  %s20, 32, %s22, [#allocation3]
    $region5: #{tpu_custom_call.1} parent=1 // pred_fallthru
      _
    // Predicated region
    $region6: #{tpu_custom_call.1} parent=1 // pred_check
      _
    $region7: #{tpu_custom_call.1} parent=1 // pred_check_branch
      %26 = sbr.rel (0) target = $region9
    $region8: #{tpu_custom_call.1} parent=1 // pred_region
      %28 = vsyncadd [#allocation6], 0
      %s29 = sshll.u32 %s1, 4
      %s30 = int_to_ptr.hbm [resolvable:$true] %s29
      %s31 = sshll.u32 [#allocation5], 4
      %s32 = int_to_ptr.vmem [resolvable:$true] %s31
      %37 = dma.hbm_to_vmem [thread:$0]  %s30, 25088, %s32, [#allocation6], 512, 512, 32
    $region9: #{tpu_custom_call.1} parent=1 // pred_fallthru
      _
    // Predicated region
    $region10: #{tpu_custom_call.1} parent=1 // pred_check
      _
    $region11: #{tpu_custom_call.1} parent=1 // pred_check_branch
      %39 = sbr.rel (0) target = $region13
    $region12: #{tpu_custom_call.1} parent=1 // pred_region
      %41 = vsyncadd [#allocation6], 0
      %s43 = sshll.u32 %s2, 4
      %s44 = int_to_ptr.hbm [resolvable:$true] %s43
      %s45 = sshll.u32 [#allocation7], 4
      %s46 = int_to_ptr.vmem [resolvable:$true] %s45
      %48 = dma.hbm_to_vmem [thread:$0]  %s44, 112, %s46, [#allocation6]
    $region13: #{tpu_custom_call.1} parent=1 // pred_fallthru
      _
    // Predicated region
    $region14: #{tpu_custom_call.1} parent=1 // pred_check
      _
    $region15: #{tpu_custom_call.1} parent=1 // pred_check_branch
      %50 = sbr.rel (0) target = $region17
    $region16: #{tpu_custom_call.1} parent=1 // pred_region
      %52 = dma.done [#allocation3], 32
    $region17: #{tpu_custom_call.1} parent=1 // pred_fallthru
      _
    // Predicated region
    $region18: #{tpu_custom_call.1} parent=1 // pred_check
      _
    $region19: #{tpu_custom_call.1} parent=1 // pred_check_branch
      %54 = sbr.rel (0) target = $region21
    $region20: #{tpu_custom_call.1} parent=1 // pred_region
      %56 = dma.done [#allocation6], 25088
    $region21: #{tpu_custom_call.1} parent=1 // pred_fallthru
      _
    // Predicated region
    $region22: #{tpu_custom_call.1} parent=1 // pred_check
      _
    $region23: #{tpu_custom_call.1} parent=1 // pred_check_branch
      %58 = sbr.rel (0) target = $region25
    $region24: #{tpu_custom_call.1} parent=1 // pred_region
      %60 = dma.done [#allocation6], 112
    $region25: #{tpu_custom_call.1} parent=1 // pred_fallthru
      _
    %v61 = vld [vmem:[#allocation2] sm:$0x3]
    %v62 = vld [vmem:[#allocation5] sm:$0xf]
    %v63 = vld [vmem:[#allocation5 + $0x8] sm:$0xf]
    %v64 = vld [vmem:[#allocation7] sm:$0x3]
    %v66 = vperm.slane %v64, 0
    %v67 = vperm.slane %v64, 1
    %vm70 = vcmask 31744
    %v72 = vsel %vm70, %v61, 0
    %vm74 = vcmask 1043456
    %v76 = vsel %vm74, %v62, 0
    %v79 = vsel %vm74, %v63, 0
    %81 = vmatpush.msra.mxu0 0.0
    %82 = vmatpush.msra.mxu0 0.0
    %83 = vmatpush.msra.mxu0 0.0
    %84 = vmatpush.msra.mxu0 0.0
    %85 = vmatpush.msra.mxu0 0.0
    %86 = vmatpush.msra.mxu0 0.0
    %87 = vmatpush.msra.mxu0 0.0
    %88 = vmatpush.msra.mxu0 0.0
    %89 = vmatpush.msra.mxu0 0.0
    %90 = vmatpush.msra.mxu0 0.0
    %91 = vmatpush.msra.mxu0 0.0
    %92 = vmatpush.msra.mxu0 0.0
    %93 = vmatpush.msra.mxu0 0.0
    %94 = vmatpush.msra.mxu0 0.0
    %95 = vmatpush.msra.mxu0 0.0
    %96 = vmatpush.msra.mxu0 %v76
    %97 = vmatmul.f32.gmra.mxu0 %v72
    %v98 = vpop.f32.mrf.mxu0
    %v99 = vadd.f32 %v66, %v98
    %100 = vdwg.mxu0
    %101 = vmatpush.msra.mxu0 0.0
    %102 = vmatpush.msra.mxu0 0.0
    %103 = vmatpush.msra.mxu0 0.0
    %104 = vmatpush.msra.mxu0 0.0
    %105 = vmatpush.msra.mxu0 0.0
    %106 = vmatpush.msra.mxu0 0.0
    %107 = vmatpush.msra.mxu0 0.0
    %108 = vmatpush.msra.mxu0 0.0
    %109 = vmatpush.msra.mxu0 0.0
    %110 = vmatpush.msra.mxu0 0.0
    %111 = vmatpush.msra.mxu0 0.0
    %112 = vmatpush.msra.mxu0 0.0
    %113 = vmatpush.msra.mxu0 0.0
    %114 = vmatpush.msra.mxu0 0.0
    %115 = vmatpush.msra.mxu0 0.0
    %116 = vmatpush.msra.mxu0 %v79
    %117 = vmatmul.f32.gmra.mxu0 %v72
    %v118 = vpop.f32.mrf.mxu0
    %v119 = vadd.f32 %v67, %v118
    %120 = vdwg.mxu0
    %v121 = vtanh.pop %v99
    %v122 = vtanh.pop %v119
    %v123 = vld [vmem:[#allocation5 + $0x20] sm:$0xff]
    %v124 = vld [vmem:[#allocation5 + $0x40] sm:$0xff]
    %v125 = vld [vmem:[#allocation5 + $0x60] sm:$0xff]
    %v126 = vld [vmem:[#allocation5 + $0x80] sm:$0xff]
    %v127 = vld [vmem:[#allocation5 + $0xa0] sm:$0xff]
    %v128 = vld [vmem:[#allocation5 + $0xc0] sm:$0xff]
    %v129 = vld [vmem:[#allocation5 + $0xe0] sm:$0xff]
    %v130 = vld [vmem:[#allocation5 + $0x100] sm:$0xff]
    %v131 = vld [vmem:[#allocation5 + $0x120] sm:$0xff]
    %v132 = vld [vmem:[#allocation5 + $0x140] sm:$0xff]
    %v133 = vld [vmem:[#allocation5 + $0x160] sm:$0xff]
    %v134 = vld [vmem:[#allocation5 + $0x180] sm:$0xff]
    %v135 = vld [vmem:[#allocation5 + $0x1a0] sm:$0xff]
    %v136 = vld [vmem:[#allocation5 + $0x1c0] sm:$0xff]
    %v137 = vld [vmem:[#allocation5 + $0x1e0] sm:$0xff]
    %v138 = vld [vmem:[#allocation5 + $0x200] sm:$0xff]
    %v139 = vld [vmem:[#allocation5 + $0x220] sm:$0xff]
    %v140 = vld [vmem:[#allocation5 + $0x240] sm:$0xff]
    %v141 = vld [vmem:[#allocation5 + $0x260] sm:$0xff]
    %v142 = vld [vmem:[#allocation5 + $0x280] sm:$0xff]
    %v143 = vld [vmem:[#allocation5 + $0x2a0] sm:$0xff]
    %v144 = vld [vmem:[#allocation5 + $0x2c0] sm:$0xff]
    %v145 = vld [vmem:[#allocation5 + $0x2e0] sm:$0xff]
    %v146 = vld [vmem:[#allocation5 + $0x300] sm:$0xff]
    %v147 = vld [vmem:[#allocation5 + $0x320] sm:$0xff]
    %v148 = vld [vmem:[#allocation5 + $0x340] sm:$0xff]
    %v149 = vld [vmem:[#allocation5 + $0x360] sm:$0xff]
    %v150 = vld [vmem:[#allocation5 + $0x380] sm:$0xff]
    %v151 = vld [vmem:[#allocation5 + $0x3a0] sm:$0xff]
    %v152 = vld [vmem:[#allocation5 + $0x3c0] sm:$0xff]
    %v153 = vld [vmem:[#allocation5 + $0x3e0] sm:$0xff]
    %v154 = vld [vmem:[#allocation5 + $0x400] sm:$0xff]
    %v155 = vld [vmem:[#allocation7 + $0x2] sm:$0x1]
    %v157 = vperm.slane %v155, 0
    %159 = vmatpush.msra.mxu0 %v138
    %160 = vmatpush.msra.mxu0 %v137
    %161 = vmatpush.msra.mxu0 %v136
    %162 = vmatpush.msra.mxu0 %v135
    %163 = vmatpush.msra.mxu0 %v134
    %164 = vmatpush.msra.mxu0 %v133
    %165 = vmatpush.msra.mxu0 %v132
    %166 = vmatpush.msra.mxu0 %v131
    %167 = vmatpush.msra.mxu0 %v130
    %168 = vmatpush.msra.mxu0 %v129
    %169 = vmatpush.msra.mxu0 %v128
    %170 = vmatpush.msra.mxu0 %v127
    %171 = vmatpush.msra.mxu0 %v126
    %172 = vmatpush.msra.mxu0 %v125
    %173 = vmatpush.msra.mxu0 %v124
    %174 = vmatpush.msra.mxu0 %v123
    %175 = vmatmul.f32.gmra.mxu0 %v121
    %v176 = vpop.f32.mrf.mxu0
    %v177 = vadd.f32 %v157, %v176
    %178 = vdwg.mxu0
    %179 = vmatpush.msra.mxu0 %v154
    %180 = vmatpush.msra.mxu0 %v153
    %181 = vmatpush.msra.mxu0 %v152
    %182 = vmatpush.msra.mxu0 %v151
    %183 = vmatpush.msra.mxu0 %v150
    %184 = vmatpush.msra.mxu0 %v149
    %185 = vmatpush.msra.mxu0 %v148
    %186 = vmatpush.msra.mxu0 %v147
    %187 = vmatpush.msra.mxu0 %v146
    %188 = vmatpush.msra.mxu0 %v145
    %189 = vmatpush.msra.mxu0 %v144
    %190 = vmatpush.msra.mxu0 %v143
    %191 = vmatpush.msra.mxu0 %v142
    %192 = vmatpush.msra.mxu0 %v141
    %193 = vmatpush.msra.mxu0 %v140
    %194 = vmatpush.msra.mxu0 %v139
    %195 = vmatmul.f32.gmra.mxu0 %v122
    %v196 = vpop.f32.mrf.mxu0
    %v197 = vadd.f32 %v177, %v196
    %198 = vdwg.mxu0
    %v199 = vtanh.pop %v197
    %v200 = vld [vmem:[#allocation5 + $0x420] sm:$0xff]
    %v201 = vld [vmem:[#allocation5 + $0x428] sm:$0xff]
    %v202 = vld [vmem:[#allocation5 + $0x430] sm:$0xff]
    %v203 = vld [vmem:[#allocation5 + $0x438] sm:$0xff]
    %v204 = vld [vmem:[#allocation5 + $0x440] sm:$0xff]
    %v205 = vld [vmem:[#allocation5 + $0x448] sm:$0xff]
    %v206 = vld [vmem:[#allocation5 + $0x450] sm:$0xff]
    %v207 = vld [vmem:[#allocation5 + $0x458] sm:$0xff]
    %v208 = vld [vmem:[#allocation5 + $0x460] sm:$0xff]
    %v209 = vld [vmem:[#allocation5 + $0x468] sm:$0xff]
    %v210 = vld [vmem:[#allocation5 + $0x470] sm:$0xff]
    %v211 = vld [vmem:[#allocation5 + $0x478] sm:$0xff]
    %v212 = vld [vmem:[#allocation5 + $0x480] sm:$0xff]
    %v213 = vld [vmem:[#allocation5 + $0x488] sm:$0xff]
    %v214 = vld [vmem:[#allocation5 + $0x490] sm:$0xff]
    %v215 = vld [vmem:[#allocation5 + $0x498] sm:$0xff]
    %v216 = vld [vmem:[#allocation5 + $0x4a0] sm:$0xff]
    %v217 = vld [vmem:[#allocation5 + $0x4a8] sm:$0xff]
    %v218 = vld [vmem:[#allocation5 + $0x4b0] sm:$0xff]
    %v219 = vld [vmem:[#allocation5 + $0x4b8] sm:$0xff]
    %v220 = vld [vmem:[#allocation5 + $0x4c0] sm:$0xff]
    %v221 = vld [vmem:[#allocation5 + $0x4c8] sm:$0xff]
    %v222 = vld [vmem:[#allocation5 + $0x4d0] sm:$0xff]
    %v223 = vld [vmem:[#allocation5 + $0x4d8] sm:$0xff]
    %v224 = vld [vmem:[#allocation5 + $0x4e0] sm:$0xff]
    %v225 = vld [vmem:[#allocation5 + $0x4e8] sm:$0xff]
    %v226 = vld [vmem:[#allocation5 + $0x4f0] sm:$0xff]
    %v227 = vld [vmem:[#allocation5 + $0x4f8] sm:$0xff]
    %v228 = vld [vmem:[#allocation5 + $0x500] sm:$0xff]
    %v229 = vld [vmem:[#allocation5 + $0x508] sm:$0xff]
    %v230 = vld [vmem:[#allocation5 + $0x510] sm:$0xff]
    %v231 = vld [vmem:[#allocation5 + $0x518] sm:$0xff]
    %v232 = vld [vmem:[#allocation5 + $0x520] sm:$0xff]
    %v233 = vld [vmem:[#allocation5 + $0x528] sm:$0xff]
    %v234 = vld [vmem:[#allocation5 + $0x530] sm:$0xff]
    %v235 = vld [vmem:[#allocation5 + $0x538] sm:$0xff]
    %v236 = vld [vmem:[#allocation5 + $0x540] sm:$0xff]
    %v237 = vld [vmem:[#allocation5 + $0x548] sm:$0xff]
    %v238 = vld [vmem:[#allocation5 + $0x550] sm:$0xff]
    %v239 = vld [vmem:[#allocation5 + $0x558] sm:$0xff]
    %v240 = vld [vmem:[#allocation5 + $0x560] sm:$0xff]
    %v241 = vld [vmem:[#allocation5 + $0x568] sm:$0xff]
    %v242 = vld [vmem:[#allocation5 + $0x570] sm:$0xff]
    %v243 = vld [vmem:[#allocation5 + $0x578] sm:$0xff]
    %v244 = vld [vmem:[#allocation5 + $0x580] sm:$0xff]
    %v245 = vld [vmem:[#allocation5 + $0x588] sm:$0xff]
    %v246 = vld [vmem:[#allocation5 + $0x590] sm:$0xff]
    %v247 = vld [vmem:[#allocation5 + $0x598] sm:$0xff]
    %v248 = vld [vmem:[#allocation5 + $0x5a0] sm:$0xff]
    %v249 = vld [vmem:[#allocation5 + $0x5a8] sm:$0xff]
    %v250 = vld [vmem:[#allocation5 + $0x5b0] sm:$0xff]
    %v251 = vld [vmem:[#allocation5 + $0x5b8] sm:$0xff]
    %v252 = vld [vmem:[#allocation5 + $0x5c0] sm:$0xff]
    %v253 = vld [vmem:[#allocation5 + $0x5c8] sm:$0xff]
    %v254 = vld [vmem:[#allocation5 + $0x5d0] sm:$0xff]
    %v255 = vld [vmem:[#allocation5 + $0x5d8] sm:$0xff]
    %v256 = vld [vmem:[#allocation5 + $0x5e0] sm:$0xff]
    %v257 = vld [vmem:[#allocation5 + $0x5e8] sm:$0xff]
    %v258 = vld [vmem:[#allocation5 + $0x5f0] sm:$0xff]
    %v259 = vld [vmem:[#allocation5 + $0x5f8] sm:$0xff]
    %v260 = vld [vmem:[#allocation5 + $0x600] sm:$0xff]
    %v261 = vld [vmem:[#allocation5 + $0x608] sm:$0xff]
    %v262 = vld [vmem:[#allocation5 + $0x610] sm:$0xff]
    %v263 = vld [vmem:[#allocation5 + $0x618] sm:$0xff]
    %v264 = vld [vmem:[#allocation7 + $0x3] sm:$0xf]
    %v266 = vperm.slane %v264, 0
    %v267 = vperm.slane %v264, 1
    %v268 = vperm.slane %v264, 2
    %v269 = vperm.slane %v264, 3
    %274 = vmatpush.msra.mxu0 %v260
    %275 = vmatpush.msra.mxu0 %v256
    %276 = vmatpush.msra.mxu0 %v252
    %277 = vmatpush.msra.mxu0 %v248
    %278 = vmatpush.msra.mxu0 %v244
    %279 = vmatpush.msra.mxu0 %v240
    %280 = vmatpush.msra.mxu0 %v236
    %281 = vmatpush.msra.mxu0 %v232
    %282 = vmatpush.msra.mxu0 %v228
    %283 = vmatpush.msra.mxu0 %v224
    %284 = vmatpush.msra.mxu0 %v220
    %285 = vmatpush.msra.mxu0 %v216
    %286 = vmatpush.msra.mxu0 %v212
    %287 = vmatpush.msra.mxu0 %v208
    %288 = vmatpush.msra.mxu0 %v204
    %289 = vmatpush.msra.mxu0 %v200
    %290 = vmatmul.f32.gmra.mxu0 %v199
    %v291 = vpop.f32.mrf.mxu0
    %v292 = vadd.f32 %v266, %v291
    %293 = vdwg.mxu0
    %294 = vmatpush.msra.mxu0 %v261
    %295 = vmatpush.msra.mxu0 %v257
    %296 = vmatpush.msra.mxu0 %v253
    %297 = vmatpush.msra.mxu0 %v249
    %298 = vmatpush.msra.mxu0 %v245
    %299 = vmatpush.msra.mxu0 %v241
    %300 = vmatpush.msra.mxu0 %v237
    %301 = vmatpush.msra.mxu0 %v233
    %302 = vmatpush.msra.mxu0 %v229
    %303 = vmatpush.msra.mxu0 %v225
    %304 = vmatpush.msra.mxu0 %v221
    %305 = vmatpush.msra.mxu0 %v217
    %306 = vmatpush.msra.mxu0 %v213
    %307 = vmatpush.msra.mxu0 %v209
    %308 = vmatpush.msra.mxu0 %v205
    %309 = vmatpush.msra.mxu0 %v201
    %310 = vmatmul.f32.gmra.mxu0 %v199
    %v311 = vpop.f32.mrf.mxu0
    %v312 = vadd.f32 %v267, %v311
    %313 = vdwg.mxu0
    %314 = vmatpush.msra.mxu0 %v262
    %315 = vmatpush.msra.mxu0 %v258
    %316 = vmatpush.msra.mxu0 %v254
    %317 = vmatpush.msra.mxu0 %v250
    %318 = vmatpush.msra.mxu0 %v246
    %319 = vmatpush.msra.mxu0 %v242
    %320 = vmatpush.msra.mxu0 %v238
    %321 = vmatpush.msra.mxu0 %v234
    %322 = vmatpush.msra.mxu0 %v230
    %323 = vmatpush.msra.mxu0 %v226
    %324 = vmatpush.msra.mxu0 %v222
    %325 = vmatpush.msra.mxu0 %v218
    %326 = vmatpush.msra.mxu0 %v214
    %327 = vmatpush.msra.mxu0 %v210
    %328 = vmatpush.msra.mxu0 %v206
    %329 = vmatpush.msra.mxu0 %v202
    %330 = vmatmul.f32.gmra.mxu0 %v199
    %v331 = vpop.f32.mrf.mxu0
    %v332 = vadd.f32 %v268, %v331
    %333 = vdwg.mxu0
    %334 = vmatpush.msra.mxu0 %v263
    %335 = vmatpush.msra.mxu0 %v259
    %336 = vmatpush.msra.mxu0 %v255
    %337 = vmatpush.msra.mxu0 %v251
    %338 = vmatpush.msra.mxu0 %v247
    %339 = vmatpush.msra.mxu0 %v243
    %340 = vmatpush.msra.mxu0 %v239
    %341 = vmatpush.msra.mxu0 %v235
    %342 = vmatpush.msra.mxu0 %v231
    %343 = vmatpush.msra.mxu0 %v227
    %344 = vmatpush.msra.mxu0 %v223
    %345 = vmatpush.msra.mxu0 %v219
    %346 = vmatpush.msra.mxu0 %v215
    %347 = vmatpush.msra.mxu0 %v211
    %348 = vmatpush.msra.mxu0 %v207
    %349 = vmatpush.msra.mxu0 %v203
    %350 = vmatmul.f32.gmra.mxu0 %v199
    %v351 = vpop.f32.mrf.mxu0
    %v352 = vadd.f32 %v269, %v351
    %353 = vdwg.mxu0
    %v356 = vrot.slane %v312, 6
    %vm357 = vcmask 1041408
    %v358 = vsel %vm357, %v292, %v356
    %360 = vst [vmem:[#allocation8] sm:$0xf] %v358
    %v363 = vrot.slane %v352, 6
    %v364 = vsel %vm357, %v332, %v363
    %366 = vst [vmem:[#allocation9] sm:$0xf] %v364
    // Predicated region
    $region26: #{tpu_custom_call.1} parent=1 // pred_check
      _
    $region27: #{tpu_custom_call.1} parent=1 // pred_check_branch
      %368 = sbr.rel (0) target = $region29
    $region28: #{tpu_custom_call.1} parent=1 // pred_region
      %370 = vsyncadd [#allocation4], 0
      %s372 = sshll.u32 [#allocation8], 4
      %s373 = int_to_ptr.vmem [resolvable:$true] %s372
      %s374 = sshll.u32 %s3, 4
      %s375 = int_to_ptr.hbm [resolvable:$true] %s374
      %377 = dma.vmem_to_hbm [thread:$0]  %s373, 64, %s375, [#allocation4]
    $region29: #{tpu_custom_call.1} parent=1 // pred_fallthru
      _
    // Predicated region
    $region30: #{tpu_custom_call.1} parent=1 // pred_check
      _
    $region31: #{tpu_custom_call.1} parent=1 // pred_check_branch
      %379 = sbr.rel (0) target = $region33
    $region32: #{tpu_custom_call.1} parent=1 // pred_region
      %381 = vsyncadd [#allocation10], 0
      %s383 = sshll.u32 [#allocation9], 4
      %s384 = int_to_ptr.vmem [resolvable:$true] %s383
      %s385 = sshll.u32 %s4, 4
      %s386 = int_to_ptr.hbm [resolvable:$true] %s385
      %388 = dma.vmem_to_hbm [thread:$0]  %s384, 64, %s386, [#allocation10]
    $region33: #{tpu_custom_call.1} parent=1 // pred_fallthru
      _
    // Predicated region
    $region34: #{tpu_custom_call.1} parent=1 // pred_check
      _
    $region35: #{tpu_custom_call.1} parent=1 // pred_check_branch
      %390 = sbr.rel (0) target = $region37
    $region36: #{tpu_custom_call.1} parent=1 // pred_region
      %392 = dma.done [#allocation4], 64
    $region37: #{tpu_custom_call.1} parent=1 // pred_fallthru
      _
    // Predicated region
    $region38: #{tpu_custom_call.1} parent=1 // pred_check
      _
    $region39: #{tpu_custom_call.1} parent=1 // pred_check_branch
      %394 = sbr.rel (0) target = $region41
    $region40: #{tpu_custom_call.1} parent=1 // pred_region
      %396 = dma.done [#allocation10], 64
    $region41: #{tpu_custom_call.1} parent=1 // pred_fallthru
      _
    %397 = vsyncpa [#allocation3], 1
    %398 = vsyncpa [#allocation6], 1
    %399 = vsyncpa [#allocation4], 1
    %400 = vsyncpa [#allocation10], 1

</llo_original>
